<compile_context>
chip_gen: v5e
topology: v5e:2x2
jax: 0.10.0
libtpu: 0.0.40
codegen_flags: <defaults>
</compile_context>

<pallas_src>
import math

import jax
import jax.numpy as jnp
from jax.experimental import pallas as pl
from jax.experimental.pallas import tpu as pltpu

OBS_DIM = 16
ACT_DIM = 4
HIDDEN = (32, 32)
BATCH = 8

_LOG_2PI = math.log(2.0 * math.pi)
_OMS_EPS = 1e-8

# ---- packed-parameter buffer layout (single f32 (PACK_ROWS, 128) array) ----
FUSED_H1 = 2 * HIDDEN[0]   # actor | critic hidden-1, concatenated -> 64
FUSED_H2 = 2 * HIDDEN[1]   # 64
OUT_W = 8                  # output slab columns: [action(4) | value(1) | logp(1) | pad(2)]
LANES = 128


def _ru8(x):
    return ((x + 7) // 8) * 8


ROW_W1 = 0                            # rows [0, 16)   : fused layer-1 weight (16, 64)
ROW_W2 = ROW_W1 + _ru8(OBS_DIM)       # rows [16, 80)  : block-diag layer-2 weight (64, 64)
ROW_W3 = ROW_W2 + _ru8(FUSED_H1)      # rows [80, 144) : block-diag layer-3 weight (64, 8)
ROW_VEC = ROW_W3 + _ru8(FUSED_H2)     # rows [144, 152): biases / std / logp constant
PACK_ROWS = ROW_VEC + 8               # 152 (all block starts are multiples of 8)


def _actor_critic_kernel(params_ref, obs_ref, noise_ref, out_ref):
    # Static, tile-aligned views into the single packed parameter buffer (zero-cost slices:
    # every block starts at a sublane multiple of 8 and lane offset 0).
    w1 = params_ref[ROW_W1:ROW_W1 + OBS_DIM, 0:FUSED_H1]      # (16, 64), OMS folded in
    w2 = params_ref[ROW_W2:ROW_W2 + FUSED_H1, 0:FUSED_H2]     # (64, 64), block-diagonal
    w3 = params_ref[ROW_W3:ROW_W3 + FUSED_H2, 0:OUT_W]        # (64, 8),  block-diagonal
    vec = params_ref[ROW_VEC:ROW_VEC + 8, :]                  # (8, 128): biases / std / const

    b1 = vec[0:1, 0:FUSED_H1]
    b2 = vec[1:2, 0:FUSED_H2]
    b3 = vec[2:3, 0:OUT_W]
    std = vec[3:4, 0:ACT_DIM]          # exp(log_std), precomputed at pack time
    logp_c = vec[4:5, 0:1]             # -sum(log_std) - 0.5*ACT_DIM*log(2*pi)

    # Normalization (obs - mean)/(std + eps) is folded into w1/b1: feed raw obs directly.
    # TODO(synk): omnisafe's OnlineMeanStd can optionally clip; default forward() does not.
    obs = obs_ref[...]                                                        # (B, OBS_DIM)
    h = jnp.tanh(jnp.dot(obs, w1, preferred_element_type=jnp.float32) + b1)   # (B, 64)
    h = jnp.tanh(jnp.dot(h, w2, preferred_element_type=jnp.float32) + b2)     # (B, 64)
    h3 = jnp.dot(h, w3, preferred_element_type=jnp.float32) + b3              # (B, 8)

    mu = h3[:, 0:ACT_DIM]                 # actor mean head
    value = h3[:, ACT_DIM:ACT_DIM + 1]    # critic V(s) head

    noise = noise_ref[...]                # eps ~ N(0, I), pre-sampled in the wrapper
    action = mu + std * noise             # dist.sample()
    # log N(a|mu,std).sum(-1) = -0.5*sum(eps^2) - sum(log_std) - 0.5*D*log(2*pi)
    logp = -0.5 * jnp.sum(noise * noise, axis=-1, keepdims=True) + logp_c

    # Single lane-contiguous output slab -> one writeback DMA.
    out_ref[:, 0:ACT_DIM] = action
    out_ref[:, ACT_DIM:ACT_DIM + 1] = value
    out_ref[:, ACT_DIM + 1:ACT_DIM + 2] = logp
    out_ref[:, ACT_DIM + 2:OUT_W] = jnp.zeros(
        (action.shape[0], OUT_W - ACT_DIM - 2), jnp.float32
    )


def actor_critic_step(obs, packed_params, noise):
    """Fused ActorCritic.step: returns (action, value, logp_a)."""
    batch = obs.shape[0]
    vmem = pl.BlockSpec(memory_space=pltpu.MemorySpace.VMEM)
    # TODO(synk): for large vectorized-env batches, add a grid over batch with block
    # (128, feature) and dimension_semantics=("parallel",) so v7x's 2nd TensorCore is used;
    # at BATCH=8 a gridless single-block call is optimal.
    out = pl.pallas_call(
        _actor_critic_kernel,
        out_shape=jax.ShapeDtypeStruct((batch, OUT_W), jnp.float32),
        in_specs=[vmem, vmem, vmem],
        out_specs=vmem,
    )(packed_params, obs, noise)
    # columns: [0:ACT_DIM]=action, [ACT_DIM]=value (squeezed), [ACT_DIM+1]=logp (summed)
    return out[:, :ACT_DIM], out[:, ACT_DIM], out[:, ACT_DIM + 1]


def pack_params(params):
    """One-time (init / param-update) transform of the raw module parameters into the
    single tile-aligned kernel buffer.  Folds OnlineMeanStd into layer-1, fuses
    actor/critic into block-diagonal weights, precomputes exp(log_std) and the
    constant part of logp."""
    h1, h2 = HIDDEN
    inv = 1.0 / (params["oms_std"] + _OMS_EPS)                        # (1, OBS_DIM)

    # layer 1: concat actor|critic, fold normalization x = (obs - mean) * inv
    w1_cat = jnp.concatenate([params["wa1"], params["wc1"]], axis=1)  # (OBS_DIM, 64)
    b1_cat = jnp.concatenate([params["ba1"], params["bc1"]], axis=1)  # (1, 64)
    w1f = inv.T * w1_cat                                              # diag(inv) @ W1
    b1f = b1_cat - (params["oms_mean"] * inv) @ w1_cat

    # layer 2: block-diagonal [[Wa2, 0], [0, Wc2]]
    w2f = jnp.zeros((FUSED_H1, FUSED_H2), jnp.float32)
    w2f = w2f.at[:h1, :h2].set(params["wa2"]).at[h1:, h2:].set(params["wc2"])
    b2f = jnp.concatenate([params["ba2"], params["bc2"]], axis=1)     # (1, 64)

    # layer 3: block-diagonal, output cols [0:ACT_DIM]=mu, [ACT_DIM]=value, rest zero
    w3f = jnp.zeros((FUSED_H2, OUT_W), jnp.float32)
    w3f = w3f.at[:h2, :ACT_DIM].set(params["wa3"])
    w3f = w3f.at[h2:, ACT_DIM:ACT_DIM + 1].set(params["wc3"])
    b3f = jnp.zeros((1, OUT_W), jnp.float32)
    b3f = b3f.at[:, :ACT_DIM].set(params["ba3"])
    b3f = b3f.at[:, ACT_DIM:ACT_DIM + 1].set(params["bc3"])

    std = jnp.exp(params["log_std"])                                  # (1, ACT_DIM)
    logp_const = -jnp.sum(params["log_std"]) - 0.5 * ACT_DIM * _LOG_2PI

    packed = jnp.zeros((PACK_ROWS, LANES), jnp.float32)
    packed = packed.at[ROW_W1:ROW_W1 + OBS_DIM, 0:FUSED_H1].set(w1f)
    packed = packed.at[ROW_W2:ROW_W2 + FUSED_H1, 0:FUSED_H2].set(w2f)
    packed = packed.at[ROW_W3:ROW_W3 + FUSED_H2, 0:OUT_W].set(w3f)
    packed = packed.at[ROW_VEC + 0, 0:FUSED_H1].set(b1f[0])
    packed = packed.at[ROW_VEC + 1, 0:FUSED_H2].set(b2f[0])
    packed = packed.at[ROW_VEC + 2, 0:OUT_W].set(b3f[0])
    packed = packed.at[ROW_VEC + 3, 0:ACT_DIM].set(std[0])
    packed = packed.at[ROW_VEC + 4, 0].set(logp_const)
    return packed


def _init_params(key):
    """Deterministic synthetic parameters matching the module's __init__ shapes."""
    ks = jax.random.split(key, 12)
    h1, h2 = HIDDEN

    def lin(k, fan_in, fan_out):
        scale = 1.0 / math.sqrt(fan_in)
        return scale * jax.random.normal(k, (fan_in, fan_out), dtype=jnp.float32)

    return {
        # OnlineMeanStd running statistics (synthetic but deterministic)
        "oms_mean": 0.1 * jax.random.normal(ks[0], (1, OBS_DIM), dtype=jnp.float32),
        "oms_std": 0.5 + jnp.abs(jax.random.normal(ks[1], (1, OBS_DIM), dtype=jnp.float32)),
        # actor mean-network
        "wa1": lin(ks[2], OBS_DIM, h1), "ba1": jnp.zeros((1, h1), jnp.float32),
        "wa2": lin(ks[3], h1, h2),      "ba2": jnp.zeros((1, h2), jnp.float32),
        "wa3": lin(ks[4], h2, ACT_DIM), "ba3": jnp.zeros((1, ACT_DIM), jnp.float32),
        # state-independent log_std (annealed via anneal_exploration in torch; fixed here)
        "log_std": -0.5 * jnp.ones((1, ACT_DIM), jnp.float32),
        # reward critic network
        "wc1": lin(ks[5], OBS_DIM, h1), "bc1": jnp.zeros((1, h1), jnp.float32),
        "wc2": lin(ks[6], h1, h2),      "bc2": jnp.zeros((1, h2), jnp.float32),
        "wc3": lin(ks[7], h2, 1),       "bc3": jnp.zeros((1, 1), jnp.float32),
    }


def _mm(a, b):
    return jnp.dot(a, b, precision=jax.lax.Precision.HIGHEST)


def _reference_step(obs, params, noise):
    """Pure-JAX reference of the original (unfused) torch forward."""
    x = (obs - params["oms_mean"]) / (params["oms_std"] + _OMS_EPS)
    hc = jnp.tanh(_mm(x, params["wc1"]) + params["bc1"])
    hc = jnp.tanh(_mm(hc, params["wc2"]) + params["bc2"])
    value = (_mm(hc, params["wc3"]) + params["bc3"])[:, 0]
    ha = jnp.tanh(_mm(x, params["wa1"]) + params["ba1"])
    ha = jnp.tanh(_mm(ha, params["wa2"]) + params["ba2"])
    mu = _mm(ha, params["wa3"]) + params["ba3"]
    std = jnp.exp(params["log_std"])
    action = mu + std * noise
    logp = jnp.sum(-0.5 * noise * noise - params["log_std"] - 0.5 * _LOG_2PI, axis=-1)
    return action, value, logp


if __name__ == "__main__":
    key = jax.random.PRNGKey(0)
    k_params, k_obs, k_noise = jax.random.split(key, 3)

    params = _init_params(k_params)
    packed = pack_params(params)  # done once at init / param-update time, not per step
    obs = jax.random.normal(k_obs, (BATCH, OBS_DIM), dtype=jnp.float32)
    noise = jax.random.normal(k_noise, (BATCH, ACT_DIM), dtype=jnp.float32)  # dist.sample() eps

    action, value, logp = actor_critic_step(obs, packed, noise)
    jax.block_until_ready((action, value, logp))

    # shape / finiteness checks
    assert action.shape == (BATCH, ACT_DIM)
    assert value.shape == (BATCH,)
    assert logp.shape == (BATCH,)
    assert bool(jnp.all(jnp.isfinite(action)))
    assert bool(jnp.all(jnp.isfinite(value)))
    assert bool(jnp.all(jnp.isfinite(logp)))

    # numerical check against the unfused pure-JAX reference (tolerance covers MXU f32 passes)
    ref_a, ref_v, ref_l = _reference_step(obs, params, noise)
    assert bool(jnp.allclose(action, ref_a, atol=2e-3, rtol=2e-3))
    assert bool(jnp.allclose(value, ref_v, atol=2e-3, rtol=2e-3))
    assert bool(jnp.allclose(logp, ref_l, atol=2e-3, rtol=2e-3))

    print("KERNEL_OK")
</pallas_src>

<mosaic_0001>
module attributes {stable_mosaic.version = 11 : i64} {
  func.func @_actor_critic_kernel(%arg0: memref<152x128xf32, #tpu.memory_space<vmem>>, %arg1: memref<8x16xf32, #tpu.memory_space<vmem>>, %arg2: memref<8x4xf32, #tpu.memory_space<vmem>>, %arg3: memref<8x8xf32, #tpu.memory_space<vmem>>) attributes {dimension_semantics = [], scalar_prefetch = 0 : i64, scratch_operands = 0 : i64, tpu.core_type = #tpu.core_type<tc>} {
    %c0 = arith.constant 0 : index
    %c0_0 = arith.constant 0 : index
    %0 = vector.load %arg0[%c0, %c0_0] : memref<152x128xf32, #tpu.memory_space<vmem>>, vector<16x64xf32>
    %c16 = arith.constant 16 : index
    %c0_1 = arith.constant 0 : index
    %1 = vector.load %arg0[%c16, %c0_1] : memref<152x128xf32, #tpu.memory_space<vmem>>, vector<64x64xf32>
    %c80 = arith.constant 80 : index
    %c0_2 = arith.constant 0 : index
    %2 = vector.load %arg0[%c80, %c0_2] : memref<152x128xf32, #tpu.memory_space<vmem>>, vector<64x8xf32>
    %c144 = arith.constant 144 : index
    %c0_3 = arith.constant 0 : index
    %3 = vector.load %arg0[%c144, %c0_3] : memref<152x128xf32, #tpu.memory_space<vmem>>, vector<8x128xf32>
    %4 = vector.extract_strided_slice %3 {offsets = [0, 0], sizes = [1, 64], strides = [1, 1]} : vector<8x128xf32> to vector<1x64xf32>
    %5 = vector.extract_strided_slice %3 {offsets = [1, 0], sizes = [1, 64], strides = [1, 1]} : vector<8x128xf32> to vector<1x64xf32>
    %6 = vector.extract_strided_slice %3 {offsets = [2, 0], sizes = [1, 8], strides = [1, 1]} : vector<8x128xf32> to vector<1x8xf32>
    %7 = vector.extract_strided_slice %3 {offsets = [3, 0], sizes = [1, 4], strides = [1, 1]} : vector<8x128xf32> to vector<1x4xf32>
    %8 = vector.extract_strided_slice %3 {offsets = [4, 0], sizes = [1, 1], strides = [1, 1]} : vector<8x128xf32> to vector<1x1xf32>
    %c0_4 = arith.constant 0 : index
    %c0_5 = arith.constant 0 : index
    %9 = vector.load %arg1[%c0_4, %c0_5] : memref<8x16xf32, #tpu.memory_space<vmem>>, vector<8x16xf32>
    %cst = arith.constant dense<0.000000e+00> : vector<8x64xf32>
    %10 = tpu.matmul %9, %0, %cst {dimension_numbers = #tpu.dot_dimension_numbers<[1], [0], [0], [1], [0, 0, 1, 1], [], []>} : vector<8x16xf32>, vector<16x64xf32>, vector<8x64xf32> -> vector<8x64xf32>
    %11 = vector.broadcast %4 : vector<1x64xf32> to vector<8x64xf32>
    %12 = arith.addf %10, %11 : vector<8x64xf32>
    %13 = math.tanh %12 : vector<8x64xf32>
    %cst_6 = arith.constant dense<0.000000e+00> : vector<8x64xf32>
    %14 = tpu.matmul %13, %1, %cst_6 {dimension_numbers = #tpu.dot_dimension_numbers<[1], [0], [0], [1], [0, 0, 1, 1], [], []>} : vector<8x64xf32>, vector<64x64xf32>, vector<8x64xf32> -> vector<8x64xf32>
    %15 = vector.broadcast %5 : vector<1x64xf32> to vector<8x64xf32>
    %16 = arith.addf %14, %15 : vector<8x64xf32>
    %17 = math.tanh %16 : vector<8x64xf32>
    %cst_7 = arith.constant dense<0.000000e+00> : vector<8x8xf32>
    %18 = tpu.matmul %17, %2, %cst_7 {dimension_numbers = #tpu.dot_dimension_numbers<[1], [0], [0], [1], [0, 0, 1, 1], [], []>} : vector<8x64xf32>, vector<64x8xf32>, vector<8x8xf32> -> vector<8x8xf32>
    %19 = vector.broadcast %6 : vector<1x8xf32> to vector<8x8xf32>
    %20 = arith.addf %18, %19 : vector<8x8xf32>
    %21 = vector.extract_strided_slice %20 {offsets = [0, 0], sizes = [8, 4], strides = [1, 1]} : vector<8x8xf32> to vector<8x4xf32>
    %22 = vector.extract_strided_slice %20 {offsets = [0, 4], sizes = [8, 1], strides = [1, 1]} : vector<8x8xf32> to vector<8x1xf32>
    %c0_8 = arith.constant 0 : index
    %c0_9 = arith.constant 0 : index
    %23 = vector.load %arg2[%c0_8, %c0_9] : memref<8x4xf32, #tpu.memory_space<vmem>>, vector<8x4xf32>
    %24 = vector.broadcast %7 : vector<1x4xf32> to vector<8x4xf32>
    %25 = arith.mulf %24, %23 : vector<8x4xf32>
    %26 = arith.addf %21, %25 : vector<8x4xf32>
    %27 = arith.mulf %23, %23 : vector<8x4xf32>
    %cst_10 = arith.constant dense<0.000000e+00> : vector<8xf32>
    %28 = vector.multi_reduction <add>, %27, %cst_10 [1] : vector<8x4xf32> to vector<8xf32>
    %29 = vector.shape_cast %28 : vector<8xf32> to vector<8x1xf32>
    %cst_11 = arith.constant -5.000000e-01 : f32
    %30 = vector.broadcast %cst_11 : f32 to vector<8x1xf32>
    %31 = arith.mulf %30, %29 : vector<8x1xf32>
    %32 = vector.broadcast %8 : vector<1x1xf32> to vector<8x1xf32>
    %33 = arith.addf %31, %32 : vector<8x1xf32>
    %c0_12 = arith.constant 0 : index
    %c0_13 = arith.constant 0 : index
    %34 = vector.load %arg3[%c0_12, %c0_13] : memref<8x8xf32, #tpu.memory_space<vmem>>, vector<8x4xf32>
    tpu.vector_store %arg3[%c0_12, %c0_13], %26 {strides = array<i32>} : memref<8x8xf32, #tpu.memory_space<vmem>>, vector<8x4xf32>,
    %c0_14 = arith.constant 0 : index
    %c4 = arith.constant 4 : index
    %35 = vector.load %arg3[%c0_14, %c4] : memref<8x8xf32, #tpu.memory_space<vmem>>, vector<8x1xf32>
    tpu.vector_store %arg3[%c0_14, %c4], %22 {strides = array<i32>} : memref<8x8xf32, #tpu.memory_space<vmem>>, vector<8x1xf32>,
    %c0_15 = arith.constant 0 : index
    %c5 = arith.constant 5 : index
    %36 = vector.load %arg3[%c0_15, %c5] : memref<8x8xf32, #tpu.memory_space<vmem>>, vector<8x1xf32>
    tpu.vector_store %arg3[%c0_15, %c5], %33 {strides = array<i32>} : memref<8x8xf32, #tpu.memory_space<vmem>>, vector<8x1xf32>,
    %cst_16 = arith.constant 0.000000e+00 : f32
    %37 = vector.broadcast %cst_16 : f32 to vector<8x2xf32>
    %c0_17 = arith.constant 0 : index
    %c6 = arith.constant 6 : index
    %38 = vector.load %arg3[%c0_17, %c6] : memref<8x8xf32, #tpu.memory_space<vmem>>, vector<8x2xf32>
    tpu.vector_store %arg3[%c0_17, %c6], %37 {strides = array<i32>} : memref<8x8xf32, #tpu.memory_space<vmem>>, vector<8x2xf32>,
    return
  }
}

</mosaic_0001>

<llo_original>
// kernel: tpu_custom_call.1
$region0: #{tpu_custom_call.1}
  #allocation0 [shape = 'u32[]', space=smem, size = 0x4, offset = 0x4, fixed_abs, tag = 'smem constant byte address 0x4 - core index']
  #allocation1 [shape = 'u32[72,128]{1,0:T(1,128)}', space=vmem, size = 0x9000, scoped, tag = 'internal scratch']
  %s0 = inlined_call_operand.hbm [shape: f32[152,128], index: 0, kind: input, shape index: {}]
  %s1 = inlined_call_operand.vmem [shape: f32[8,16], index: 1, kind: input, shape index: {}]
  %s2 = inlined_call_operand.vmem [shape: f32[8,4], index: 2, kind: input, shape index: {}]
  %s3 = inlined_call_operand.hbm [shape: f32[8,8], index: 3, kind: output, shape index: {}]
  %s4 = sld [smem:[#allocation0]]
  $region26: #{tpu_custom_call.1} parent=0
    _
  %s6 = ssub.s32 1, %s4
  %s7 = scalar_select 0, %s6, %s4
  $region1: #{tpu_custom_call.1} parent=0
    #allocation2 [shape = 'u8[77824]{0}', space=vmem, size = 0x13000, scoped, tag = 'input window, operand 0, single buffered']
    #allocation3 [shape = 's32[1]{0}', space=sflag, size = 0x4, scoped, tag = 'scoped memory for tpu_custom_call.1']
    #allocation4 [shape = 's32[1]{0}', space=sflag, size = 0x4, scoped, tag = 'scoped memory for tpu_custom_call.1']
    #allocation5 [shape = 'u8[4096]{0}', space=vmem, size = 0x1000, scoped, tag = 'output window, operand 0, single buffered']
    %8 = vsyncpa [#allocation3], 0
    %9 = vsyncpa [#allocation4], 0
    // Predicated region
    $region2: #{tpu_custom_call.1} parent=1 // pred_check
      _
    $region3: #{tpu_custom_call.1} parent=1 // pred_check_branch
      %11 = sbr.rel (0) target = $region5
    $region4: #{tpu_custom_call.1} parent=1 // pred_region
      %13 = vsyncadd [#allocation3], 0
      %s14 = sshll.u32 %s0, 4
      %s15 = int_to_ptr.hbm [resolvable:$true] %s14
      %s16 = sshll.u32 [#allocation2], 4
      %s17 = int_to_ptr.vmem [resolvable:$true] %s16
      %22 = dma.hbm_to_vmem [thread:$0]  %s15, 2432, %s17, [#allocation3], 128, 128, 8
    $region5: #{tpu_custom_call.1} parent=1 // pred_fallthru
      _
    // Predicated region
    $region6: #{tpu_custom_call.1} parent=1 // pred_check
      _
    $region7: #{tpu_custom_call.1} parent=1 // pred_check_branch
      %24 = sbr.rel (0) target = $region9
    $region8: #{tpu_custom_call.1} parent=1 // pred_region
      _
    $region9: #{tpu_custom_call.1} parent=1 // pred_fallthru
      _
    // Predicated region
    $region10: #{tpu_custom_call.1} parent=1 // pred_check
      _
    $region11: #{tpu_custom_call.1} parent=1 // pred_check_branch
      %26 = sbr.rel (0) target = $region13
    $region12: #{tpu_custom_call.1} parent=1 // pred_region
      _
    $region13: #{tpu_custom_call.1} parent=1 // pred_fallthru
      _
    // Predicated region
    $region14: #{tpu_custom_call.1} parent=1 // pred_check
      _
    $region15: #{tpu_custom_call.1} parent=1 // pred_check_branch
      %28 = sbr.rel (0) target = $region17
    $region16: #{tpu_custom_call.1} parent=1 // pred_region
      %30 = dma.done [#allocation3], 2432
    $region17: #{tpu_custom_call.1} parent=1 // pred_fallthru
      _
    %v31 = vld [vmem:[#allocation2] sm:$0xff]
    %v32 = vld [vmem:[#allocation2 + $0x8] sm:$0xff]
    %v33 = vld [vmem:[#allocation2 + $0x10] sm:$0xff]
    %v34 = vld [vmem:[#allocation2 + $0x18] sm:$0xff]
    %v35 = vld [vmem:[#allocation2 + $0x20] sm:$0xff]
    %v36 = vld [vmem:[#allocation2 + $0x28] sm:$0xff]
    %v37 = vld [vmem:[#allocation2 + $0x30] sm:$0xff]
    %v38 = vld [vmem:[#allocation2 + $0x38] sm:$0xff]
    %v39 = vld [vmem:[#allocation2 + $0x40] sm:$0xff]
    %v40 = vld [vmem:[#allocation2 + $0x48] sm:$0xff]
    %v41 = vld [vmem:[#allocation2 + $0x50] sm:$0xff]
    %v42 = vld [vmem:[#allocation2 + $0x58] sm:$0xff]
    %v43 = vld [vmem:[#allocation2 + $0x60] sm:$0xff]
    %v44 = vld [vmem:[#allocation2 + $0x68] sm:$0xff]
    %v45 = vld [vmem:[#allocation2 + $0x70] sm:$0xff]
    %v46 = vld [vmem:[#allocation2 + $0x78] sm:$0xff]
    %v47 = vld [vmem:[#allocation2 + $0x80] sm:$0xff]
    %v48 = vld [vmem:[#allocation2 + $0x88] sm:$0xff]
    %v49 = vld [vmem:[#allocation2 + $0x90] sm:$0xff]
    %v50 = vld [vmem:[%s1] sm:$0xff]
    %v51 = vperm.slane %v49, 0
    %vm52 = vcmask 130048
    %v54 = vsel %vm52, %v50, 0
    %56 = vmatpush.msra.mxu0 0.0
    %57 = vmatpush.msra.mxu0 0.0
    %58 = vmatpush.msra.mxu0 0.0
    %59 = vmatpush.msra.mxu0 0.0
    %60 = vmatpush.msra.mxu0 0.0
    %61 = vmatpush.msra.mxu0 0.0
    %62 = vmatpush.msra.mxu0 0.0
    %63 = vmatpush.msra.mxu0 0.0
    %64 = vmatpush.msra.mxu0 0.0
    %65 = vmatpush.msra.mxu0 0.0
    %66 = vmatpush.msra.mxu0 0.0
    %67 = vmatpush.msra.mxu0 0.0
    %68 = vmatpush.msra.mxu0 0.0
    %69 = vmatpush.msra.mxu0 0.0
    %70 = vmatpush.msra.mxu0 %v32
    %71 = vmatpush.msra.mxu0 %v31
    %72 = vmatmul.f32.gmra.mxu0 %v54
    %v73 = vpop.f32.mrf.mxu0
    %v74 = vadd.f32 %v51, %v73
    %75 = vdwg.mxu0
    %v76 = vtanh.pop %v74
    %v77 = vperm.slane %v49, 1
    %vm78 = vcmask 523264
    %v80 = vsel %vm78, %v76, 0
    %82 = vmatpush.msra.mxu0 0.0
    %83 = vmatpush.msra.mxu0 0.0
    %84 = vmatpush.msra.mxu0 0.0
    %85 = vmatpush.msra.mxu0 0.0
    %86 = vmatpush.msra.mxu0 0.0
    %87 = vmatpush.msra.mxu0 0.0
    %88 = vmatpush.msra.mxu0 0.0
    %89 = vmatpush.msra.mxu0 0.0
    %90 = vmatpush.msra.mxu0 %v40
    %91 = vmatpush.msra.mxu0 %v39
    %92 = vmatpush.msra.mxu0 %v38
    %93 = vmatpush.msra.mxu0 %v37
    %94 = vmatpush.msra.mxu0 %v36
    %95 = vmatpush.msra.mxu0 %v35
    %96 = vmatpush.msra.mxu0 %v34
    %97 = vmatpush.msra.mxu0 %v33
    %98 = vmatmul.f32.gmra.mxu0 %v80
    %v99 = vpop.f32.mrf.mxu0
    %v100 = vadd.f32 %v77, %v99
    %101 = vdwg.mxu0
    %v102 = vtanh.pop %v100
    %v103 = vperm.slane %v49, 2
    %v105 = vsel %vm78, %v102, 0
    %107 = vmatpush.msra.mxu0 0.0
    %108 = vmatpush.msra.mxu0 0.0
    %109 = vmatpush.msra.mxu0 0.0
    %110 = vmatpush.msra.mxu0 0.0
    %111 = vmatpush.msra.mxu0 0.0
    %112 = vmatpush.msra.mxu0 0.0
    %113 = vmatpush.msra.mxu0 0.0
    %114 = vmatpush.msra.mxu0 0.0
    %115 = vmatpush.msra.mxu0 %v48
    %116 = vmatpush.msra.mxu0 %v47
    %117 = vmatpush.msra.mxu0 %v46
    %118 = vmatpush.msra.mxu0 %v45
    %119 = vmatpush.msra.mxu0 %v44
    %120 = vmatpush.msra.mxu0 %v43
    %121 = vmatpush.msra.mxu0 %v42
    %122 = vmatpush.msra.mxu0 %v41
    %123 = vmatmul.f32.gmra.mxu0 %v105
    %v124 = vpop.f32.mrf.mxu0
    %v125 = vadd.f32 %v103, %v124
    %126 = vdwg.mxu0
    %v127 = vld [vmem:[%s2] sm:$0xff]
    %v128 = vperm.slane %v49, 3
    %v129 = vmul.f32 %v128, %v127
    %v130 = vadd.f32 %v125, %v129
    %v131 = vmul.f32 %v127, %v127
    %vm132 = vcmask 31744
    %v133 = vsel %vm132, %v131, 0.0
    %134 = vadd.xlane.f32.xlu0 %v133
    %v135 = vpop.xlane.xlu0 %134
    %v136 = vmul.f32 %v135, -0.5
    %v137 = vperm.slane %v49, 4
    %v138 = vadd.f32 %v136, %v137
    %139 = vst.msk [vmem:[#allocation5] sm:$0xff] %vm132, %v130
    %vm140 = vcmask 39968
    %141 = vst.msk [vmem:[#allocation5] sm:$0xff] %vm140, %v125
    %143 = vrot.lane.b32.xlu0 %v138, 5
    %v144 = vpop.permute.xlu0 %143
    %vm146 = vcmask 48168
    %147 = vst.msk [vmem:[#allocation5] sm:$0xff] %vm146, %v144
    %vm148 = vcmask 64560
    %149 = vst.msk [vmem:[#allocation5] sm:$0xff] %vm148, 0.0
    // Predicated region
    $region18: #{tpu_custom_call.1} parent=1 // pred_check
      _
    $region19: #{tpu_custom_call.1} parent=1 // pred_check_branch
      %151 = sbr.rel (0) target = $region21
    $region20: #{tpu_custom_call.1} parent=1 // pred_region
      %153 = vsyncadd [#allocation4], 0
      %s155 = sshll.u32 [#allocation5], 4
      %s156 = int_to_ptr.vmem [resolvable:$true] %s155
      %s157 = sshll.u32 %s3, 4
      %s158 = int_to_ptr.hbm [resolvable:$true] %s157
      %160 = dma.vmem_to_hbm [thread:$0]  %s156, 128, %s158, [#allocation4]
    $region21: #{tpu_custom_call.1} parent=1 // pred_fallthru
      _
    // Predicated region
    $region22: #{tpu_custom_call.1} parent=1 // pred_check
      _
    $region23: #{tpu_custom_call.1} parent=1 // pred_check_branch
      %162 = sbr.rel (0) target = $region25
    $region24: #{tpu_custom_call.1} parent=1 // pred_region
      %164 = dma.done [#allocation4], 128
    $region25: #{tpu_custom_call.1} parent=1 // pred_fallthru
      _
    %165 = vsyncpa [#allocation3], 1
    %166 = vsyncpa [#allocation4], 1

</llo_original>
